<compile_context>
chip_gen: v5e
topology: v5e:2x2
jax: 0.10.0
libtpu: 0.0.40
codegen_flags: <defaults>
</compile_context>

<pallas_src>
import jax
import jax.numpy as jnp
from jax.experimental import pallas as pl
from jax.experimental.pallas import tpu as pltpu


def _rec_kernel(x_ref, w1c_ref, b1_ref, w2_ref, b2_ref, out_ref):
    # x_ref  : (N, C, HW)     -- HW on the 128-lane axis
    # w1c_ref: (C, Chid, 1)   -- per-input-channel column of the 1x1 conv weight
    # b1_ref : (Chid, 1)
    # w2_ref : (Chid, NPAD)   -- fc weight, classes zero-padded to 128 lanes
    # b2_ref : (1, NPAD)
    # out_ref: (N, NPAD)
    N, C, HW = x_ref.shape
    inv_hw = 1.0 / HW                       # compile-time constant (full-HW block)

    x = x_ref[...]                          # (N, C, HW)

    # 1x1 conv as C broadcast-FMAs on the VPU, vectorized over the whole batch:
    #   acc[n, k, p] = sum_c w1[c, k] * x[n, c, p]
    # (Chid, 1) weight column broadcasts against (N, 1, HW) -> (N, Chid, HW);
    # each channel weight / the bias is broadcast exactly once (not per image).
    acc = w1c_ref[0] * x[:, 0:1, :]
    for c in range(1, C):
        acc = acc + w1c_ref[c] * x[:, c:c + 1, :]

    h = jnp.maximum(acc + b1_ref[...], 0.0)                 # bias + ReLU, (N, Chid, HW)

    # Global average pool over spatial positions: lane-axis (XLU) reduction
    # times a precomputed 1/HW constant (no divide in the hot path).
    pooled = jnp.sum(h, axis=-1, keepdims=True) * inv_hw    # (N, Chid, 1)

    # Classifier head, batched, no in-kernel transpose (tiny N -> VPU path):
    #   logits[n, j] = sum_k pooled[n, k] * w2[k, j]
    logits = jnp.sum(pooled * w2_ref[...], axis=1)          # (N, NPAD)

    # Single lane-dense store of the whole batch (no sublane concatenate).
    out_ref[...] = logits + b2_ref[...]


def rec_wrapper_forward(x_nchw, w1, b1, w2, b2):
    """RecWrapper.forward: delegates to the wrapped rec-branch module."""
    N, C, H, W = x_nchw.shape
    HW = H * W
    Chid = w1.shape[1]
    n_cls = w2.shape[1]
    NPAD = pl.cdiv(n_cls, 128) * 128                    # lane-dense output width

    # Free reshape of NCHW (no transpose); HW ends up on the lane axis.
    x = x_nchw.reshape(N, C, HW)
    # Per-input-channel hidden-weight columns: w1_cols[c] = w1[c, :].reshape(Chid, 1)
    w1_cols = w1.reshape(C, Chid, 1)
    b1_col = b1.reshape(Chid, 1)
    w2_pad = jnp.pad(w2, ((0, 0), (0, NPAD - n_cls)))
    b2_pad = jnp.pad(b2.reshape(1, n_cls), ((0, 0), (0, NPAD - n_cls)))

    # All blocks equal the full array extents, so the (8,128) divisibility
    # rule does not apply; grid=(1,) keeps every operand resident and DMA'd
    # exactly once.  (Scaled path: tile HW / batch instead -- see header.)
    out_pad = pl.pallas_call(
        _rec_kernel,
        out_shape=jax.ShapeDtypeStruct((N, NPAD), jnp.float32),
        grid_spec=pltpu.PrefetchScalarGridSpec(
            num_scalar_prefetch=0,
            grid=(1,),                                   # whole batch in one step
            in_specs=[
                pl.BlockSpec((N, C, HW), lambda i: (0, 0, 0)),     # x
                pl.BlockSpec((C, Chid, 1), lambda i: (0, 0, 0)),   # conv weight cols
                pl.BlockSpec((Chid, 1), lambda i: (0, 0)),         # conv bias
                pl.BlockSpec((Chid, NPAD), lambda i: (0, 0)),      # fc weight (padded)
                pl.BlockSpec((1, NPAD), lambda i: (0, 0)),         # fc bias (padded)
            ],
            out_specs=pl.BlockSpec((N, NPAD), lambda i: (0, 0)),
        ),
        compiler_params=pltpu.CompilerParams(
            dimension_semantics=("arbitrary",)),
    )(x, w1_cols, b1_col, w2_pad, b2_pad)

    return out_pad[:, :n_cls]


def _reference(x_nchw, w1, b1, w2, b2):
    N, C, H, W = x_nchw.shape
    x = jnp.transpose(x_nchw, (0, 2, 3, 1)).reshape(N, H * W, C)
    h = jnp.maximum(jnp.einsum("npc,ck->npk", x, w1) + b1, 0.0)
    pooled = jnp.mean(h, axis=1)
    return pooled @ w2 + b2


if __name__ == "__main__":
    # Small shapes consistent with a conv-input module: N=2, C=4, H=W=16.
    N, C, H, W = 2, 4, 16, 16
    Chid, n_cls = 32, 8

    key = jax.random.PRNGKey(0)
    kx, k1, k2, k3, k4 = jax.random.split(key, 5)
    x = jax.random.normal(kx, (N, C, H, W), dtype=jnp.float32)

    # Deterministic synthetic parameters (module __init__ shapes).
    w1 = jax.random.normal(k1, (C, Chid), dtype=jnp.float32) * 0.1      # 1x1 conv weight
    b1 = jax.random.normal(k2, (Chid,), dtype=jnp.float32) * 0.1        # conv bias
    w2 = jax.random.normal(k3, (Chid, n_cls), dtype=jnp.float32) * 0.1  # fc weight
    b2 = jax.random.normal(k4, (n_cls,), dtype=jnp.float32) * 0.1       # fc bias

    out = rec_wrapper_forward(x, w1, b1, w2, b2)
    out = jax.block_until_ready(out)

    ref = _reference(x, w1, b1, w2, b2)
    assert out.shape == (N, n_cls)
    assert jnp.allclose(out, ref, atol=1e-4, rtol=1e-4)

    print("KERNEL_OK")
</pallas_src>

<mosaic_0001>
module attributes {stable_mosaic.version = 11 : i64} {
  func.func @_rec_kernel(%arg0: i32, %arg1: memref<2x4x256xf32, #tpu.memory_space<vmem>>, %arg2: memref<4x32x1xf32, #tpu.memory_space<vmem>>, %arg3: memref<32x1xf32, #tpu.memory_space<vmem>>, %arg4: memref<32x128xf32, #tpu.memory_space<vmem>>, %arg5: memref<1x128xf32, #tpu.memory_space<vmem>>, %arg6: memref<2x128xf32, #tpu.memory_space<vmem>>) attributes {dimension_semantics = [#tpu.dimension_semantics<arbitrary>], iteration_bounds = array<i64: 1>, scalar_prefetch = 0 : i64, scratch_operands = 0 : i64, tpu.core_type = #tpu.core_type<tc>, window_params = [{pipeline_mode = #tpu.pipeline_mode<synchronous>, transform_indices = @transform_0, window_bounds = array<i64: 2, 4, 256>}, {pipeline_mode = #tpu.pipeline_mode<synchronous>, transform_indices = @transform_1, window_bounds = array<i64: 4, 32, 1>}, {pipeline_mode = #tpu.pipeline_mode<synchronous>, transform_indices = @transform_2, window_bounds = array<i64: 32, 1>}, {pipeline_mode = #tpu.pipeline_mode<synchronous>, transform_indices = @transform_3, window_bounds = array<i64: 32, 128>}, {pipeline_mode = #tpu.pipeline_mode<synchronous>, transform_indices = @transform_4, window_bounds = array<i64: 1, 128>}, {pipeline_mode = #tpu.pipeline_mode<synchronous>, transform_indices = @transform_5, window_bounds = array<i64: 2, 128>}]} {
    %c0 = arith.constant 0 : index
    %c0_0 = arith.constant 0 : index
    %c0_1 = arith.constant 0 : index
    %0 = vector.load %arg1[%c0, %c0_0, %c0_1] : memref<2x4x256xf32, #tpu.memory_space<vmem>>, vector<2x4x256xf32>
    %c0_2 = arith.constant 0 : index
    %c0_3 = arith.constant 0 : index
    %c0_4 = arith.constant 0 : index
    %1 = vector.load %arg2[%c0_2, %c0_3, %c0_4] : memref<4x32x1xf32, #tpu.memory_space<vmem>>, vector<1x32x1xf32>
    %2 = vector.shape_cast %1 : vector<1x32x1xf32> to vector<32x1xf32>
    %3 = vector.extract_strided_slice %0 {offsets = [0, 0, 0], sizes = [2, 1, 256], strides = [1, 1, 1]} : vector<2x4x256xf32> to vector<2x1x256xf32>
    %4 = vector.shape_cast %2 : vector<32x1xf32> to vector<1x32x1xf32>
    %5 = vector.broadcast %4 : vector<1x32x1xf32> to vector<2x32x256xf32>
    %6 = vector.broadcast %3 : vector<2x1x256xf32> to vector<2x32x256xf32>
    %7 = arith.mulf %5, %6 : vector<2x32x256xf32>
    %c1 = arith.constant 1 : index
    %c0_5 = arith.constant 0 : index
    %c0_6 = arith.constant 0 : index
    %8 = vector.load %arg2[%c1, %c0_5, %c0_6] : memref<4x32x1xf32, #tpu.memory_space<vmem>>, vector<1x32x1xf32>
    %9 = vector.shape_cast %8 : vector<1x32x1xf32> to vector<32x1xf32>
    %10 = vector.extract_strided_slice %0 {offsets = [0, 1, 0], sizes = [2, 1, 256], strides = [1, 1, 1]} : vector<2x4x256xf32> to vector<2x1x256xf32>
    %11 = vector.shape_cast %9 : vector<32x1xf32> to vector<1x32x1xf32>
    %12 = vector.broadcast %11 : vector<1x32x1xf32> to vector<2x32x256xf32>
    %13 = vector.broadcast %10 : vector<2x1x256xf32> to vector<2x32x256xf32>
    %14 = arith.mulf %12, %13 : vector<2x32x256xf32>
    %15 = arith.addf %7, %14 : vector<2x32x256xf32>
    %c2 = arith.constant 2 : index
    %c0_7 = arith.constant 0 : index
    %c0_8 = arith.constant 0 : index
    %16 = vector.load %arg2[%c2, %c0_7, %c0_8] : memref<4x32x1xf32, #tpu.memory_space<vmem>>, vector<1x32x1xf32>
    %17 = vector.shape_cast %16 : vector<1x32x1xf32> to vector<32x1xf32>
    %18 = vector.extract_strided_slice %0 {offsets = [0, 2, 0], sizes = [2, 1, 256], strides = [1, 1, 1]} : vector<2x4x256xf32> to vector<2x1x256xf32>
    %19 = vector.shape_cast %17 : vector<32x1xf32> to vector<1x32x1xf32>
    %20 = vector.broadcast %19 : vector<1x32x1xf32> to vector<2x32x256xf32>
    %21 = vector.broadcast %18 : vector<2x1x256xf32> to vector<2x32x256xf32>
    %22 = arith.mulf %20, %21 : vector<2x32x256xf32>
    %23 = arith.addf %15, %22 : vector<2x32x256xf32>
    %c3 = arith.constant 3 : index
    %c0_9 = arith.constant 0 : index
    %c0_10 = arith.constant 0 : index
    %24 = vector.load %arg2[%c3, %c0_9, %c0_10] : memref<4x32x1xf32, #tpu.memory_space<vmem>>, vector<1x32x1xf32>
    %25 = vector.shape_cast %24 : vector<1x32x1xf32> to vector<32x1xf32>
    %26 = vector.extract_strided_slice %0 {offsets = [0, 3, 0], sizes = [2, 1, 256], strides = [1, 1, 1]} : vector<2x4x256xf32> to vector<2x1x256xf32>
    %27 = vector.shape_cast %25 : vector<32x1xf32> to vector<1x32x1xf32>
    %28 = vector.broadcast %27 : vector<1x32x1xf32> to vector<2x32x256xf32>
    %29 = vector.broadcast %26 : vector<2x1x256xf32> to vector<2x32x256xf32>
    %30 = arith.mulf %28, %29 : vector<2x32x256xf32>
    %31 = arith.addf %23, %30 : vector<2x32x256xf32>
    %c0_11 = arith.constant 0 : index
    %c0_12 = arith.constant 0 : index
    %32 = vector.load %arg3[%c0_11, %c0_12] : memref<32x1xf32, #tpu.memory_space<vmem>>, vector<32x1xf32>
    %33 = vector.shape_cast %32 : vector<32x1xf32> to vector<1x32x1xf32>
    %34 = vector.broadcast %33 : vector<1x32x1xf32> to vector<2x32x256xf32>
    %35 = arith.addf %31, %34 : vector<2x32x256xf32>
    %cst = arith.constant 0.000000e+00 : f32
    %36 = vector.broadcast %cst : f32 to vector<2x32x256xf32>
    %37 = arith.maximumf %35, %36 : vector<2x32x256xf32>
    %cst_13 = arith.constant dense<0.000000e+00> : vector<2x32xf32>
    %38 = vector.multi_reduction <add>, %37, %cst_13 [2] : vector<2x32x256xf32> to vector<2x32xf32>
    %39 = vector.shape_cast %38 : vector<2x32xf32> to vector<2x32x1xf32>
    %cst_14 = arith.constant 3.906250e-03 : f32
    %40 = vector.broadcast %cst_14 : f32 to vector<2x32x1xf32>
    %41 = arith.mulf %39, %40 : vector<2x32x1xf32>
    %c0_15 = arith.constant 0 : index
    %c0_16 = arith.constant 0 : index
    %42 = vector.load %arg4[%c0_15, %c0_16] : memref<32x128xf32, #tpu.memory_space<vmem>>, vector<32x128xf32>
    %43 = vector.shape_cast %42 : vector<32x128xf32> to vector<1x32x128xf32>
    %44 = vector.broadcast %41 : vector<2x32x1xf32> to vector<2x32x128xf32>
    %45 = vector.broadcast %43 : vector<1x32x128xf32> to vector<2x32x128xf32>
    %46 = arith.mulf %44, %45 : vector<2x32x128xf32>
    %cst_17 = arith.constant dense<0.000000e+00> : vector<2x128xf32>
    %47 = vector.multi_reduction <add>, %46, %cst_17 [1] : vector<2x32x128xf32> to vector<2x128xf32>
    %c0_18 = arith.constant 0 : index
    %c0_19 = arith.constant 0 : index
    %48 = vector.load %arg5[%c0_18, %c0_19] : memref<1x128xf32, #tpu.memory_space<vmem>>, vector<1x128xf32>
    %49 = vector.broadcast %48 : vector<1x128xf32> to vector<2x128xf32>
    %50 = arith.addf %47, %49 : vector<2x128xf32>
    %c0_20 = arith.constant 0 : index
    %c0_21 = arith.constant 0 : index
    %51 = vector.load %arg6[%c0_20, %c0_21] : memref<2x128xf32, #tpu.memory_space<vmem>>, vector<2x128xf32>
    tpu.vector_store %arg6[%c0_20, %c0_21], %50 {strides = array<i32>} : memref<2x128xf32, #tpu.memory_space<vmem>>, vector<2x128xf32>,
    return
  }
  func.func @transform_0(%arg0: i32) -> (i32, i32, i32) {
    %c0_i32 = arith.constant 0 : i32
    %c0_i32_0 = arith.constant 0 : i32
    %c0_i32_1 = arith.constant 0 : i32
    %c0_i32_2 = arith.constant 0 : i32
    return %c0_i32, %c0_i32_0, %c0_i32_1 : i32, i32, i32
  }
  func.func @transform_1(%arg0: i32) -> (i32, i32, i32) {
    %c0_i32 = arith.constant 0 : i32
    %c0_i32_0 = arith.constant 0 : i32
    %c0_i32_1 = arith.constant 0 : i32
    %c0_i32_2 = arith.constant 0 : i32
    return %c0_i32, %c0_i32_0, %c0_i32_1 : i32, i32, i32
  }
  func.func @transform_2(%arg0: i32) -> (i32, i32) {
    %c0_i32 = arith.constant 0 : i32
    %c0_i32_0 = arith.constant 0 : i32
    %c0_i32_1 = arith.constant 0 : i32
    return %c0_i32, %c0_i32_0 : i32, i32
  }
  func.func @transform_3(%arg0: i32) -> (i32, i32) {
    %c0_i32 = arith.constant 0 : i32
    %c0_i32_0 = arith.constant 0 : i32
    %c0_i32_1 = arith.constant 0 : i32
    return %c0_i32, %c0_i32_0 : i32, i32
  }
  func.func @transform_4(%arg0: i32) -> (i32, i32) {
    %c0_i32 = arith.constant 0 : i32
    %c0_i32_0 = arith.constant 0 : i32
    %c0_i32_1 = arith.constant 0 : i32
    return %c0_i32, %c0_i32_0 : i32, i32
  }
  func.func @transform_5(%arg0: i32) -> (i32, i32) {
    %c0_i32 = arith.constant 0 : i32
    %c0_i32_0 = arith.constant 0 : i32
    %c0_i32_1 = arith.constant 0 : i32
    return %c0_i32, %c0_i32_0 : i32, i32
  }
}

</mosaic_0001>

<llo_original>
// kernel: tpu_custom_call.1
$region0: #{tpu_custom_call.1}
  #allocation0 [shape = 'u32[]', space=smem, size = 0x4, offset = 0x4, fixed_abs, tag = 'smem constant byte address 0x4 - core index']
  #allocation1 [shape = 'u32[72,128]{1,0:T(1,128)}', space=vmem, size = 0x9000, scoped, tag = 'internal scratch']
  %s0 = inlined_call_operand.vmem [shape: f32[2,4,256], index: 0, kind: input, shape index: {}]
  %s1 = inlined_call_operand.vmem [shape: f32[4,32,1], index: 1, kind: input, shape index: {}]
  %s2 = inlined_call_operand.vmem [shape: f32[32,1], index: 2, kind: input, shape index: {}]
  %s3 = inlined_call_operand.vmem [shape: f32[32,128], index: 3, kind: input, shape index: {}]
  %s4 = inlined_call_operand.vmem [shape: f32[1,128], index: 4, kind: input, shape index: {}]
  %s5 = inlined_call_operand.hbm [shape: f32[2,128], index: 5, kind: output, shape index: {}]
  %s6 = sld [smem:[#allocation0]]
  $region30: #{tpu_custom_call.1} parent=0
    _
  %s8 = ssub.s32 1, %s6
  %s9 = scalar_select 0, %s8, %s6
  $region1: #{tpu_custom_call.1} parent=0
    #allocation2 [shape = 'u8[1024]{0}', space=vmem, size = 0x400, scoped, tag = 'output window, operand 0, single buffered']
    #allocation3 [shape = 's32[1]{0}', space=sflag, size = 0x4, scoped, tag = 'scoped memory for tpu_custom_call.1']
    %10 = vsyncpa [#allocation3], 0
    // Predicated region
    $region2: #{tpu_custom_call.1} parent=1 // pred_check
      _
    $region3: #{tpu_custom_call.1} parent=1 // pred_check_branch
      %12 = sbr.rel (0) target = $region5
    $region4: #{tpu_custom_call.1} parent=1 // pred_region
      _
    $region5: #{tpu_custom_call.1} parent=1 // pred_fallthru
      _
    // Predicated region
    $region6: #{tpu_custom_call.1} parent=1 // pred_check
      _
    $region7: #{tpu_custom_call.1} parent=1 // pred_check_branch
      %14 = sbr.rel (0) target = $region9
    $region8: #{tpu_custom_call.1} parent=1 // pred_region
      _
    $region9: #{tpu_custom_call.1} parent=1 // pred_fallthru
      _
    // Predicated region
    $region10: #{tpu_custom_call.1} parent=1 // pred_check
      _
    $region11: #{tpu_custom_call.1} parent=1 // pred_check_branch
      %16 = sbr.rel (0) target = $region13
    $region12: #{tpu_custom_call.1} parent=1 // pred_region
      _
    $region13: #{tpu_custom_call.1} parent=1 // pred_fallthru
      _
    // Predicated region
    $region14: #{tpu_custom_call.1} parent=1 // pred_check
      _
    $region15: #{tpu_custom_call.1} parent=1 // pred_check_branch
      %18 = sbr.rel (0) target = $region17
    $region16: #{tpu_custom_call.1} parent=1 // pred_region
      _
    $region17: #{tpu_custom_call.1} parent=1 // pred_fallthru
      _
    // Predicated region
    $region18: #{tpu_custom_call.1} parent=1 // pred_check
      _
    $region19: #{tpu_custom_call.1} parent=1 // pred_check_branch
      %20 = sbr.rel (0) target = $region21
    $region20: #{tpu_custom_call.1} parent=1 // pred_region
      _
    $region21: #{tpu_custom_call.1} parent=1 // pred_fallthru
      _
    %v21 = vld [vmem:[%s0] sm:$0xff]
    %v22 = vld [vmem:[%s0 + $0x8] sm:$0xff]
    %v23 = vld [vmem:[%s1] sm:$0xff]
    %v24 = vld [vmem:[%s1 + $0x8] sm:$0xff]
    %v25 = vld [vmem:[%s1 + $0x10] sm:$0xff]
    %v26 = vld [vmem:[%s1 + $0x18] sm:$0xff]
    %28 = vset.pattern.permute.xlu0 0
    %29 = vperm.xlu0 %28, %v23
    %v30 = vpop.permute.xlu0 %29
    %33 = vset.pattern.permute.xlu0 0
    %34 = vperm.xlu0 %33, %v24
    %v35 = vpop.permute.xlu0 %34
    %38 = vset.pattern.permute.xlu0 0
    %39 = vperm.xlu0 %38, %v25
    %v40 = vpop.permute.xlu0 %39
    %43 = vset.pattern.permute.xlu0 0
    %44 = vperm.xlu0 %43, %v26
    %v45 = vpop.permute.xlu0 %44
    %v49 = vperm.slane %v21, 0
    %v50 = vperm.slane %v21, 4
    %v51 = vperm.slane %v22, 0
    %v52 = vperm.slane %v22, 4
    %v57 = vperm.slane %v49, 0
    %v58 = vperm.slane %v50, 0
    %v59 = vperm.slane %v51, 0
    %v60 = vperm.slane %v52, 0
    %v61 = vmul.f32 %v30, %v57
    %v62 = vmul.f32 %v30, %v58
    %v63 = vmul.f32 %v35, %v57
    %v64 = vmul.f32 %v35, %v58
    %v65 = vmul.f32 %v40, %v57
    %v66 = vmul.f32 %v40, %v58
    %v67 = vmul.f32 %v45, %v57
    %v68 = vmul.f32 %v45, %v58
    %v69 = vmul.f32 %v30, %v59
    %v70 = vmul.f32 %v30, %v60
    %v71 = vmul.f32 %v35, %v59
    %v72 = vmul.f32 %v35, %v60
    %v73 = vmul.f32 %v40, %v59
    %v74 = vmul.f32 %v40, %v60
    %v75 = vmul.f32 %v45, %v59
    %v76 = vmul.f32 %v45, %v60
    %s77 = scalar_lea.vmem %s1, 32
    %v78 = vld [vmem:[%s77] sm:$0xff]
    %v79 = vld [vmem:[%s77 + $0x8] sm:$0xff]
    %v80 = vld [vmem:[%s77 + $0x10] sm:$0xff]
    %v81 = vld [vmem:[%s77 + $0x18] sm:$0xff]
    %83 = vset.pattern.permute.xlu0 0
    %84 = vperm.xlu0 %83, %v78
    %v85 = vpop.permute.xlu0 %84
    %88 = vset.pattern.permute.xlu0 0
    %89 = vperm.xlu0 %88, %v79
    %v90 = vpop.permute.xlu0 %89
    %93 = vset.pattern.permute.xlu0 0
    %94 = vperm.xlu0 %93, %v80
    %v95 = vpop.permute.xlu0 %94
    %98 = vset.pattern.permute.xlu0 0
    %99 = vperm.xlu0 %98, %v81
    %v100 = vpop.permute.xlu0 %99
    %v102 = vperm.slane %v21, 1
    %v103 = vperm.slane %v21, 5
    %v104 = vperm.slane %v22, 1
    %v105 = vperm.slane %v22, 5
    %v110 = vperm.slane %v102, 1
    %v111 = vperm.slane %v103, 1
    %v112 = vperm.slane %v104, 1
    %v113 = vperm.slane %v105, 1
    %v114 = vmul.f32 %v85, %v110
    %v115 = vmul.f32 %v85, %v111
    %v116 = vmul.f32 %v90, %v110
    %v117 = vmul.f32 %v90, %v111
    %v118 = vmul.f32 %v95, %v110
    %v119 = vmul.f32 %v95, %v111
    %v120 = vmul.f32 %v100, %v110
    %v121 = vmul.f32 %v100, %v111
    %v122 = vmul.f32 %v85, %v112
    %v123 = vmul.f32 %v85, %v113
    %v124 = vmul.f32 %v90, %v112
    %v125 = vmul.f32 %v90, %v113
    %v126 = vmul.f32 %v95, %v112
    %v127 = vmul.f32 %v95, %v113
    %v128 = vmul.f32 %v100, %v112
    %v129 = vmul.f32 %v100, %v113
    %v130 = vadd.f32 %v61, %v114
    %v131 = vadd.f32 %v62, %v115
    %v132 = vadd.f32 %v63, %v116
    %v133 = vadd.f32 %v64, %v117
    %v134 = vadd.f32 %v65, %v118
    %v135 = vadd.f32 %v66, %v119
    %v136 = vadd.f32 %v67, %v120
    %v137 = vadd.f32 %v68, %v121
    %v138 = vadd.f32 %v69, %v122
    %v139 = vadd.f32 %v70, %v123
    %v140 = vadd.f32 %v71, %v124
    %v141 = vadd.f32 %v72, %v125
    %v142 = vadd.f32 %v73, %v126
    %v143 = vadd.f32 %v74, %v127
    %v144 = vadd.f32 %v75, %v128
    %v145 = vadd.f32 %v76, %v129
    %s146 = scalar_lea.vmem %s1, 64
    %v147 = vld [vmem:[%s146] sm:$0xff]
    %v148 = vld [vmem:[%s146 + $0x8] sm:$0xff]
    %v149 = vld [vmem:[%s146 + $0x10] sm:$0xff]
    %v150 = vld [vmem:[%s146 + $0x18] sm:$0xff]
    %152 = vset.pattern.permute.xlu0 0
    %153 = vperm.xlu0 %152, %v147
    %v154 = vpop.permute.xlu0 %153
    %157 = vset.pattern.permute.xlu0 0
    %158 = vperm.xlu0 %157, %v148
    %v159 = vpop.permute.xlu0 %158
    %162 = vset.pattern.permute.xlu0 0
    %163 = vperm.xlu0 %162, %v149
    %v164 = vpop.permute.xlu0 %163
    %167 = vset.pattern.permute.xlu0 0
    %168 = vperm.xlu0 %167, %v150
    %v169 = vpop.permute.xlu0 %168
    %v171 = vperm.slane %v21, 2
    %v172 = vperm.slane %v21, 6
    %v173 = vperm.slane %v22, 2
    %v174 = vperm.slane %v22, 6
    %v179 = vperm.slane %v171, 2
    %v180 = vperm.slane %v172, 2
    %v181 = vperm.slane %v173, 2
    %v182 = vperm.slane %v174, 2
    %v183 = vmul.f32 %v154, %v179
    %v184 = vmul.f32 %v154, %v180
    %v185 = vmul.f32 %v159, %v179
    %v186 = vmul.f32 %v159, %v180
    %v187 = vmul.f32 %v164, %v179
    %v188 = vmul.f32 %v164, %v180
    %v189 = vmul.f32 %v169, %v179
    %v190 = vmul.f32 %v169, %v180
    %v191 = vmul.f32 %v154, %v181
    %v192 = vmul.f32 %v154, %v182
    %v193 = vmul.f32 %v159, %v181
    %v194 = vmul.f32 %v159, %v182
    %v195 = vmul.f32 %v164, %v181
    %v196 = vmul.f32 %v164, %v182
    %v197 = vmul.f32 %v169, %v181
    %v198 = vmul.f32 %v169, %v182
    %v199 = vadd.f32 %v130, %v183
    %v200 = vadd.f32 %v131, %v184
    %v201 = vadd.f32 %v132, %v185
    %v202 = vadd.f32 %v133, %v186
    %v203 = vadd.f32 %v134, %v187
    %v204 = vadd.f32 %v135, %v188
    %v205 = vadd.f32 %v136, %v189
    %v206 = vadd.f32 %v137, %v190
    %v207 = vadd.f32 %v138, %v191
    %v208 = vadd.f32 %v139, %v192
    %v209 = vadd.f32 %v140, %v193
    %v210 = vadd.f32 %v141, %v194
    %v211 = vadd.f32 %v142, %v195
    %v212 = vadd.f32 %v143, %v196
    %v213 = vadd.f32 %v144, %v197
    %v214 = vadd.f32 %v145, %v198
    %s215 = scalar_lea.vmem %s1, 96
    %v216 = vld [vmem:[%s215] sm:$0xff]
    %v217 = vld [vmem:[%s215 + $0x8] sm:$0xff]
    %v218 = vld [vmem:[%s215 + $0x10] sm:$0xff]
    %v219 = vld [vmem:[%s215 + $0x18] sm:$0xff]
    %221 = vset.pattern.permute.xlu0 0
    %222 = vperm.xlu0 %221, %v216
    %v223 = vpop.permute.xlu0 %222
    %226 = vset.pattern.permute.xlu0 0
    %227 = vperm.xlu0 %226, %v217
    %v228 = vpop.permute.xlu0 %227
    %231 = vset.pattern.permute.xlu0 0
    %232 = vperm.xlu0 %231, %v218
    %v233 = vpop.permute.xlu0 %232
    %236 = vset.pattern.permute.xlu0 0
    %237 = vperm.xlu0 %236, %v219
    %v238 = vpop.permute.xlu0 %237
    %v240 = vperm.slane %v21, 3
    %v241 = vperm.slane %v21, 7
    %v242 = vperm.slane %v22, 3
    %v243 = vperm.slane %v22, 7
    %v248 = vperm.slane %v240, 3
    %v249 = vperm.slane %v241, 3
    %v250 = vperm.slane %v242, 3
    %v251 = vperm.slane %v243, 3
    %v252 = vmul.f32 %v223, %v248
    %v253 = vmul.f32 %v223, %v249
    %v254 = vmul.f32 %v228, %v248
    %v255 = vmul.f32 %v228, %v249
    %v256 = vmul.f32 %v233, %v248
    %v257 = vmul.f32 %v233, %v249
    %v258 = vmul.f32 %v238, %v248
    %v259 = vmul.f32 %v238, %v249
    %v260 = vmul.f32 %v223, %v250
    %v261 = vmul.f32 %v223, %v251
    %v262 = vmul.f32 %v228, %v250
    %v263 = vmul.f32 %v228, %v251
    %v264 = vmul.f32 %v233, %v250
    %v265 = vmul.f32 %v233, %v251
    %v266 = vmul.f32 %v238, %v250
    %v267 = vmul.f32 %v238, %v251
    %v268 = vadd.f32 %v199, %v252
    %v269 = vadd.f32 %v200, %v253
    %v270 = vadd.f32 %v201, %v254
    %v271 = vadd.f32 %v202, %v255
    %v272 = vadd.f32 %v203, %v256
    %v273 = vadd.f32 %v204, %v257
    %v274 = vadd.f32 %v205, %v258
    %v275 = vadd.f32 %v206, %v259
    %v276 = vadd.f32 %v207, %v260
    %v277 = vadd.f32 %v208, %v261
    %v278 = vadd.f32 %v209, %v262
    %v279 = vadd.f32 %v210, %v263
    %v280 = vadd.f32 %v211, %v264
    %v281 = vadd.f32 %v212, %v265
    %v282 = vadd.f32 %v213, %v266
    %v283 = vadd.f32 %v214, %v267
    %v284 = vld [vmem:[%s2] sm:$0xff]
    %v285 = vld [vmem:[%s2 + $0x8] sm:$0xff]
    %v286 = vld [vmem:[%s2 + $0x10] sm:$0xff]
    %v287 = vld [vmem:[%s2 + $0x18] sm:$0xff]
    %289 = vset.pattern.permute.xlu0 0
    %290 = vperm.xlu0 %289, %v284
    %v291 = vpop.permute.xlu0 %290
    %294 = vset.pattern.permute.xlu0 0
    %295 = vperm.xlu0 %294, %v285
    %v296 = vpop.permute.xlu0 %295
    %299 = vset.pattern.permute.xlu0 0
    %300 = vperm.xlu0 %299, %v286
    %v301 = vpop.permute.xlu0 %300
    %304 = vset.pattern.permute.xlu0 0
    %305 = vperm.xlu0 %304, %v287
    %v306 = vpop.permute.xlu0 %305
    %v308 = vadd.f32 %v268, %v291
    %v309 = vadd.f32 %v269, %v291
    %v310 = vadd.f32 %v270, %v296
    %v311 = vadd.f32 %v271, %v296
    %v312 = vadd.f32 %v272, %v301
    %v313 = vadd.f32 %v273, %v301
    %v314 = vadd.f32 %v274, %v306
    %v315 = vadd.f32 %v275, %v306
    %v316 = vadd.f32 %v276, %v291
    %v317 = vadd.f32 %v277, %v291
    %v318 = vadd.f32 %v278, %v296
    %v319 = vadd.f32 %v279, %v296
    %v320 = vadd.f32 %v280, %v301
    %v321 = vadd.f32 %v281, %v301
    %v322 = vadd.f32 %v282, %v306
    %v323 = vadd.f32 %v283, %v306
    %v324 = vmax.f32 %v308, 0.0
    %v325 = vmax.f32 %v309, 0.0
    %v326 = vmax.f32 %v310, 0.0
    %v327 = vmax.f32 %v311, 0.0
    %v328 = vmax.f32 %v312, 0.0
    %v329 = vmax.f32 %v313, 0.0
    %v330 = vmax.f32 %v314, 0.0
    %v331 = vmax.f32 %v315, 0.0
    %v332 = vmax.f32 %v316, 0.0
    %v333 = vmax.f32 %v317, 0.0
    %v334 = vmax.f32 %v318, 0.0
    %v335 = vmax.f32 %v319, 0.0
    %v336 = vmax.f32 %v320, 0.0
    %v337 = vmax.f32 %v321, 0.0
    %v338 = vmax.f32 %v322, 0.0
    %v339 = vmax.f32 %v323, 0.0
    %v340 = vadd.f32 %v324, %v325
    %341 = vadd.xlane.f32.xlu0 %v340
    %v342 = vpop.xlane.xlu0 %341
    %v343 = vadd.f32 %v326, %v327
    %344 = vadd.xlane.f32.xlu0 %v343
    %v345 = vpop.xlane.xlu0 %344
    %v346 = vadd.f32 %v328, %v329
    %347 = vadd.xlane.f32.xlu0 %v346
    %v348 = vpop.xlane.xlu0 %347
    %v349 = vadd.f32 %v330, %v331
    %350 = vadd.xlane.f32.xlu0 %v349
    %v351 = vpop.xlane.xlu0 %350
    %v352 = vadd.f32 %v332, %v333
    %353 = vadd.xlane.f32.xlu0 %v352
    %v354 = vpop.xlane.xlu0 %353
    %v355 = vadd.f32 %v334, %v335
    %356 = vadd.xlane.f32.xlu0 %v355
    %v357 = vpop.xlane.xlu0 %356
    %v358 = vadd.f32 %v336, %v337
    %359 = vadd.xlane.f32.xlu0 %v358
    %v360 = vpop.xlane.xlu0 %359
    %v361 = vadd.f32 %v338, %v339
    %362 = vadd.xlane.f32.xlu0 %v361
    %v363 = vpop.xlane.xlu0 %362
    %v364 = vmul.f32 %v342, 0.00390625
    %v365 = vmul.f32 %v345, 0.00390625
    %v366 = vmul.f32 %v348, 0.00390625
    %v367 = vmul.f32 %v351, 0.00390625
    %v368 = vmul.f32 %v354, 0.00390625
    %v369 = vmul.f32 %v357, 0.00390625
    %v370 = vmul.f32 %v360, 0.00390625
    %v371 = vmul.f32 %v363, 0.00390625
    %v372 = vld [vmem:[%s3] sm:$0xff]
    %v373 = vld [vmem:[%s3 + $0x8] sm:$0xff]
    %v374 = vld [vmem:[%s3 + $0x10] sm:$0xff]
    %v375 = vld [vmem:[%s3 + $0x18] sm:$0xff]
    %v376 = vmul.f32 %v364, %v372
    %v377 = vmul.f32 %v365, %v373
    %v378 = vmul.f32 %v366, %v374
    %v379 = vmul.f32 %v367, %v375
    %v380 = vmul.f32 %v368, %v372
    %v381 = vmul.f32 %v369, %v373
    %v382 = vmul.f32 %v370, %v374
    %v383 = vmul.f32 %v371, %v375
    %v384 = vadd.f32 %v376, %v377
    %v385 = vadd.f32 %v384, %v378
    %v386 = vadd.f32 %v385, %v379
    %v387 = vrot.slane %v386, 4
    %v388 = vadd.f32 %v386, %v387
    %v389 = vrot.slane %v388, 2
    %v390 = vadd.f32 %v388, %v389
    %v391 = vrot.slane %v390, 1
    %v392 = vadd.f32 %v390, %v391
    %v393 = vadd.f32 %v380, %v381
    %v394 = vadd.f32 %v393, %v382
    %v395 = vadd.f32 %v394, %v383
    %v396 = vrot.slane %v395, 4
    %v397 = vadd.f32 %v395, %v396
    %v398 = vrot.slane %v397, 2
    %v399 = vadd.f32 %v397, %v398
    %v400 = vrot.slane %v399, 1
    %v401 = vadd.f32 %v399, %v400
    %v402 = vld [vmem:[%s4] sm:$0x1]
    %v404 = vperm.slane %v402, 0
    %v406 = vadd.f32 %v392, %v404
    %v407 = vadd.f32 %v401, %v404
    %v410 = vrot.slane %v407, 7
    %vm411 = vcmask 1041409
    %v412 = vsel %vm411, %v410, %v406
    %414 = vst [vmem:[#allocation2] sm:$0x3] %v412
    // Predicated region
    $region22: #{tpu_custom_call.1} parent=1 // pred_check
      _
    $region23: #{tpu_custom_call.1} parent=1 // pred_check_branch
      %416 = sbr.rel (0) target = $region25
    $region24: #{tpu_custom_call.1} parent=1 // pred_region
      %418 = vsyncadd [#allocation3], 0
      %s420 = sshll.u32 [#allocation2], 4
      %s421 = int_to_ptr.vmem [resolvable:$true] %s420
      %s422 = sshll.u32 %s5, 4
      %s423 = int_to_ptr.hbm [resolvable:$true] %s422
      %425 = dma.vmem_to_hbm [thread:$0]  %s421, 32, %s423, [#allocation3]
    $region25: #{tpu_custom_call.1} parent=1 // pred_fallthru
      _
    // Predicated region
    $region26: #{tpu_custom_call.1} parent=1 // pred_check
      _
    $region27: #{tpu_custom_call.1} parent=1 // pred_check_branch
      %427 = sbr.rel (0) target = $region29
    $region28: #{tpu_custom_call.1} parent=1 // pred_region
      %429 = dma.done [#allocation3], 32
    $region29: #{tpu_custom_call.1} parent=1 // pred_fallthru
      _
    %430 = vsyncpa [#allocation3], 1

</llo_original>
